<compile_context>
chip_gen: v7x
topology: tpu7x:2x2x1
jax: 0.10.0
libtpu: 0.0.40
codegen_flags: <defaults>
</compile_context>

<pallas_src>
import functools

import jax
import jax.numpy as jnp
from jax.experimental import pallas as pl
from jax.experimental.pallas import tpu as pltpu


def _round_up(x, m):
    return ((x + m - 1) // m) * m


def _fused_sage_kernel(adj_ref, x_ref, w1_ref, b1_ref, w2_ref, b2_ref,
                       out_ref, h_ref, *, tm):
    # adj_ref : (TM, Np)      bf16  row-normalized adjacency row tile
    # x_ref   : (Np, Dp)      bf16  all node features (VMEM resident)
    # w1_ref  : (2*Dp, Hp)    bf16  [W1_l ; W1_r] stacked (neighbor | root)
    # b1_ref  : (1, Hp)       f32
    # w2_ref  : (2*Hp, Op)    bf16  [W2_l ; W2_r]
    # b2_ref  : (1, Op)       f32
    # out_ref : (TM, Op)      f32
    # h_ref   : (Np, Hp)      bf16  VMEM scratch: hidden activations, all nodes
    phase = pl.program_id(0)
    tile = pl.program_id(1)
    row0 = pl.multiple_of(tile * tm, tm)

    @pl.when(phase == 0)
    def _layer1():
        # mean-neighbor aggregation for this row tile: (TM,Np)@(Np,Dp) -> f32
        agg = jnp.dot(adj_ref[...], x_ref[...],
                      preferred_element_type=jnp.float32)
        x_tile = x_ref[pl.ds(row0, tm), :]                     # root features
        cat = jnp.concatenate([agg.astype(jnp.bfloat16), x_tile], axis=-1)
        h = jnp.dot(cat, w1_ref[...], preferred_element_type=jnp.float32)
        h = jnp.maximum(h + b1_ref[...], 0.0)                  # bias + ReLU
        # dropout(p=0.5, training=False) == identity (eval mode)
        h_ref[pl.ds(row0, tm), :] = h.astype(jnp.bfloat16)

    @pl.when(phase == 1)
    def _layer2():
        agg = jnp.dot(adj_ref[...], h_ref[...],
                      preferred_element_type=jnp.float32)
        h_tile = h_ref[pl.ds(row0, tm), :]
        cat = jnp.concatenate([agg.astype(jnp.bfloat16), h_tile], axis=-1)
        out = jnp.dot(cat, w2_ref[...], preferred_element_type=jnp.float32)
        out_ref[...] = out + b2_ref[...]


def sage_forward(x, edge_index, params):
    """SAGE.forward(x, edge_index) in eval mode, fused into one Pallas kernel."""
    n, d_in = x.shape
    hid = params["w1_l"].shape[1]
    d_out = params["w2_l"].shape[1]

    # lane-dense channel padding + MXU/sublane-aligned row tiling
    dp = _round_up(d_in, 128)
    hp = _round_up(hid, 128)
    op = _round_up(d_out, 128)
    n_pad = _round_up(n, 128)
    tm = 512 if n_pad % 512 == 0 else (256 if n_pad % 256 == 0 else 128)
    n_tiles = n_pad // tm

    # dense row-normalized (mean) adjacency, zero-padded, bf16 for the MXU
    src, dst = edge_index[0], edge_index[1]
    adj = jnp.zeros((n_pad, n_pad), jnp.float32).at[dst, src].add(1.0)
    deg = adj.sum(axis=1, keepdims=True)
    adj = (adj / jnp.maximum(deg, 1.0)).astype(jnp.bfloat16)

    xp = jnp.zeros((n_pad, dp), jnp.bfloat16).at[:n, :d_in].set(
        x.astype(jnp.bfloat16))

    # merged neighbor+root weights:  [agg | x] @ [[Wl], [Wr]] + b
    w1 = jnp.zeros((2 * dp, hp), jnp.bfloat16)
    w1 = w1.at[:d_in, :hid].set(params["w1_l"].astype(jnp.bfloat16))
    w1 = w1.at[dp:dp + d_in, :hid].set(params["w1_r"].astype(jnp.bfloat16))
    b1 = jnp.zeros((1, hp), jnp.float32).at[0, :hid].set(params["b1"])

    w2 = jnp.zeros((2 * hp, op), jnp.bfloat16)
    w2 = w2.at[:hid, :d_out].set(params["w2_l"].astype(jnp.bfloat16))
    w2 = w2.at[hp:hp + hid, :d_out].set(params["w2_r"].astype(jnp.bfloat16))
    b2 = jnp.zeros((1, op), jnp.float32).at[0, :d_out].set(params["b2"])

    kernel = functools.partial(_fused_sage_kernel, tm=tm)
    out = pl.pallas_call(
        kernel,
        out_shape=jax.ShapeDtypeStruct((n_pad, op), jnp.float32),
        grid_spec=pltpu.PrefetchScalarGridSpec(
            num_scalar_prefetch=0,
            grid=(2, n_tiles),                               # (layer phase, row tile)
            in_specs=[
                pl.BlockSpec((tm, n_pad), lambda p, t: (t, 0)),   # adj row tile
                pl.BlockSpec((n_pad, dp), lambda p, t: (0, 0)),   # x (resident)
                pl.BlockSpec((2 * dp, hp), lambda p, t: (0, 0)),  # W1 cat
                pl.BlockSpec((1, hp), lambda p, t: (0, 0)),       # b1
                pl.BlockSpec((2 * hp, op), lambda p, t: (0, 0)),  # W2 cat
                pl.BlockSpec((1, op), lambda p, t: (0, 0)),       # b2
            ],
            out_specs=pl.BlockSpec((tm, op), lambda p, t: (t, 0)),
            scratch_shapes=[pltpu.VMEM((n_pad, hp), jnp.bfloat16)],
        ),
        compiler_params=pltpu.CompilerParams(
            # phase-1 tiles depend on every phase-0 tile through the hidden
            # state scratch -> both axes must stay sequential.
            dimension_semantics=("arbitrary", "arbitrary"),
            vmem_limit_bytes=64 * 1024 * 1024,
        ),
    )(adj, xp, w1, b1, w2, b2)

    return out[:n, :d_out]


def sage_reference(x, edge_index, params):
    """Pure-JAX f32 reference (eval mode) for numerical validation."""
    n = x.shape[0]
    src, dst = edge_index[0], edge_index[1]
    adj = jnp.zeros((n, n), jnp.float32).at[dst, src].add(1.0)
    deg = adj.sum(axis=1, keepdims=True)
    adj = adj / jnp.maximum(deg, 1.0)
    h = adj @ x @ params["w1_l"] + x @ params["w1_r"] + params["b1"]
    h = jnp.maximum(h, 0.0)
    return adj @ h @ params["w2_l"] + h @ params["w2_r"] + params["b2"]


def init_params(key, in_channels, hidden_channels, out_channels):
    ks = jax.random.split(key, 6)
    s1 = 1.0 / jnp.sqrt(in_channels)
    s2 = 1.0 / jnp.sqrt(hidden_channels)
    return {
        # weights stored as (Din, Dout) = transposed nn.Linear weights
        "w1_l": jax.random.uniform(ks[0], (in_channels, hidden_channels),
                                   jnp.float32, -s1, s1),
        "w1_r": jax.random.uniform(ks[1], (in_channels, hidden_channels),
                                   jnp.float32, -s1, s1),
        "b1": jax.random.uniform(ks[2], (hidden_channels,), jnp.float32, -s1, s1),
        "w2_l": jax.random.uniform(ks[3], (hidden_channels, out_channels),
                                   jnp.float32, -s2, s2),
        "w2_r": jax.random.uniform(ks[4], (hidden_channels, out_channels),
                                   jnp.float32, -s2, s2),
        "b2": jax.random.uniform(ks[5], (out_channels,), jnp.float32, -s2, s2),
    }


if __name__ == "__main__":
    # small synthetic graph: N nodes, E directed edges
    N, E = 64, 256
    IN_C, HID_C, OUT_C = 16, 32, 8

    key = jax.random.PRNGKey(0)
    k_x, k_src, k_dst, k_param = jax.random.split(key, 4)

    x = jax.random.normal(k_x, (N, IN_C), jnp.float32)
    edge_index = jnp.stack(
        [
            jax.random.randint(k_src, (E,), 0, N, jnp.int32),
            jax.random.randint(k_dst, (E,), 0, N, jnp.int32),
        ],
        axis=0,
    )  # (2, E): row 0 = source, row 1 = target

    params = init_params(k_param, IN_C, HID_C, OUT_C)

    out = jax.jit(sage_forward)(x, edge_index, params)
    jax.block_until_ready(out)

    assert out.shape == (N, OUT_C), out.shape
    assert bool(jnp.all(jnp.isfinite(out)))

    # validate bf16-MXU / f32-accumulate kernel against the f32 reference
    ref = sage_reference(x, edge_index, params)
    max_err = float(jnp.max(jnp.abs(out - ref)))
    assert bool(jnp.allclose(out, ref, atol=1e-1, rtol=1e-1)), max_err

    print("KERNEL_OK")
</pallas_src>

<mosaic_0001>
module attributes {stable_mosaic.version = 11 : i64} {
  func.func private @main(%arg0: i32) attributes {dimension_semantics = [#tpu.dimension_semantics<core_parallel>], iteration_bounds = array<i64: 2>, tpu.core_type = #tpu.core_type<sc_scalar_subcore>, window_params = []} {
    return
  }
}

module attributes {stable_mosaic.version = 11 : i64} {
  func.func private @main(%arg0: i32) attributes {dimension_semantics = [#tpu.dimension_semantics<core_parallel>], iteration_bounds = array<i64: 2>, tpu.core_type = #tpu.core_type<sc_scalar_subcore>, window_params = []} {
    return
  }
}

module attributes {stable_mosaic.version = 11 : i64} {
  func.func @_fused_sage_kernel(%arg0: i32, %arg1: i32, %arg2: memref<128x128xbf16, #tpu.memory_space<vmem>>, %arg3: memref<128x128xbf16, #tpu.memory_space<vmem>>, %arg4: memref<256x128xbf16, #tpu.memory_space<vmem>>, %arg5: memref<1x128xf32, #tpu.memory_space<vmem>>, %arg6: memref<256x128xbf16, #tpu.memory_space<vmem>>, %arg7: memref<1x128xf32, #tpu.memory_space<vmem>>, %arg8: memref<128x128xf32, #tpu.memory_space<vmem>>, %arg9: memref<128x128xbf16, #tpu.memory_space<vmem>>) attributes {dimension_semantics = [#tpu.dimension_semantics<arbitrary>, #tpu.dimension_semantics<arbitrary>], iteration_bounds = array<i64: 2, 1>, scalar_prefetch = 0 : i64, scratch_operands = 1 : i64, tpu.core_type = #tpu.core_type<tc>, window_params = [{transform_indices = @transform_0, window_bounds = array<i64: 128, 128>}, {pipeline_mode = #tpu.pipeline_mode<synchronous>, transform_indices = @transform_1, window_bounds = array<i64: 128, 128>}, {pipeline_mode = #tpu.pipeline_mode<synchronous>, transform_indices = @transform_2, window_bounds = array<i64: 256, 128>}, {pipeline_mode = #tpu.pipeline_mode<synchronous>, transform_indices = @transform_3, window_bounds = array<i64: 1, 128>}, {pipeline_mode = #tpu.pipeline_mode<synchronous>, transform_indices = @transform_4, window_bounds = array<i64: 256, 128>}, {pipeline_mode = #tpu.pipeline_mode<synchronous>, transform_indices = @transform_5, window_bounds = array<i64: 1, 128>}, {transform_indices = @transform_6, window_bounds = array<i64: 128, 128>}]} {
    %c128_i32 = arith.constant 128 : i32
    %0 = arith.muli %arg1, %c128_i32 : i32
    %1 = tpu.assume_multiple %0, 128 : i32
    %c0_i32 = arith.constant 0 : i32
    %2 = arith.cmpi eq, %arg0, %c0_i32 : i32
    %3 = arith.extui %2 : i1 to i32
    %c0_i32_0 = arith.constant 0 : i32
    %4 = arith.cmpi ne, %3, %c0_i32_0 : i32
    scf.if %4 {
      %c0 = arith.constant 0 : index
      %c0_2 = arith.constant 0 : index
      %8 = vector.load %arg2[%c0, %c0_2] : memref<128x128xbf16, #tpu.memory_space<vmem>>, vector<128x128xbf16>
      %c0_3 = arith.constant 0 : index
      %c0_4 = arith.constant 0 : index
      %9 = vector.load %arg3[%c0_3, %c0_4] : memref<128x128xbf16, #tpu.memory_space<vmem>>, vector<128x128xbf16>
      %cst = arith.constant dense<0.000000e+00> : vector<128x128xf32>
      %10 = tpu.matmul %8, %9, %cst {dimension_numbers = #tpu.dot_dimension_numbers<[1], [0], [0], [1], [0, 0, 1, 1], [], []>} : vector<128x128xbf16>, vector<128x128xbf16>, vector<128x128xf32> -> vector<128x128xf32>
      %11 = arith.index_cast %1 : i32 to index
      %c0_5 = arith.constant 0 : index
      %12 = vector.load %arg3[%11, %c0_5] : memref<128x128xbf16, #tpu.memory_space<vmem>>, vector<128x128xbf16>
      %13 = arith.truncf %10 : vector<128x128xf32> to vector<128x128xbf16>
      %14 = tpu.concatenate %13, %12 in 1 : vector<128x128xbf16>, vector<128x128xbf16> -> vector<128x256xbf16>
      %c0_6 = arith.constant 0 : index
      %c0_7 = arith.constant 0 : index
      %15 = vector.load %arg4[%c0_6, %c0_7] : memref<256x128xbf16, #tpu.memory_space<vmem>>, vector<256x128xbf16>
      %cst_8 = arith.constant dense<0.000000e+00> : vector<128x128xf32>
      %16 = tpu.matmul %14, %15, %cst_8 {dimension_numbers = #tpu.dot_dimension_numbers<[1], [0], [0], [1], [0, 0, 1, 1], [], []>} : vector<128x256xbf16>, vector<256x128xbf16>, vector<128x128xf32> -> vector<128x128xf32>
      %c0_9 = arith.constant 0 : index
      %c0_10 = arith.constant 0 : index
      %17 = vector.load %arg5[%c0_9, %c0_10] : memref<1x128xf32, #tpu.memory_space<vmem>>, vector<1x128xf32>
      %18 = vector.broadcast %17 : vector<1x128xf32> to vector<128x128xf32>
      %19 = arith.addf %16, %18 : vector<128x128xf32>
      %cst_11 = arith.constant 0.000000e+00 : f32
      %20 = vector.broadcast %cst_11 : f32 to vector<128x128xf32>
      %21 = arith.maximumf %19, %20 : vector<128x128xf32>
      %22 = arith.truncf %21 : vector<128x128xf32> to vector<128x128xbf16>
      %23 = arith.index_cast %1 : i32 to index
      %c0_12 = arith.constant 0 : index
      %24 = vector.load %arg9[%23, %c0_12] : memref<128x128xbf16, #tpu.memory_space<vmem>>, vector<128x128xbf16>
      tpu.vector_store %arg9[%23, %c0_12], %22 {strides = array<i32>} : memref<128x128xbf16, #tpu.memory_space<vmem>>, vector<128x128xbf16>,
    } else {
    }
    %c1_i32 = arith.constant 1 : i32
    %5 = arith.cmpi eq, %arg0, %c1_i32 : i32
    %6 = arith.extui %5 : i1 to i32
    %c0_i32_1 = arith.constant 0 : i32
    %7 = arith.cmpi ne, %6, %c0_i32_1 : i32
    scf.if %7 {
      %c0 = arith.constant 0 : index
      %c0_2 = arith.constant 0 : index
      %8 = vector.load %arg2[%c0, %c0_2] : memref<128x128xbf16, #tpu.memory_space<vmem>>, vector<128x128xbf16>
      %c0_3 = arith.constant 0 : index
      %c0_4 = arith.constant 0 : index
      %9 = vector.load %arg9[%c0_3, %c0_4] : memref<128x128xbf16, #tpu.memory_space<vmem>>, vector<128x128xbf16>
      %cst = arith.constant dense<0.000000e+00> : vector<128x128xf32>
      %10 = tpu.matmul %8, %9, %cst {dimension_numbers = #tpu.dot_dimension_numbers<[1], [0], [0], [1], [0, 0, 1, 1], [], []>} : vector<128x128xbf16>, vector<128x128xbf16>, vector<128x128xf32> -> vector<128x128xf32>
      %11 = arith.index_cast %1 : i32 to index
      %c0_5 = arith.constant 0 : index
      %12 = vector.load %arg9[%11, %c0_5] : memref<128x128xbf16, #tpu.memory_space<vmem>>, vector<128x128xbf16>
      %13 = arith.truncf %10 : vector<128x128xf32> to vector<128x128xbf16>
      %14 = tpu.concatenate %13, %12 in 1 : vector<128x128xbf16>, vector<128x128xbf16> -> vector<128x256xbf16>
      %c0_6 = arith.constant 0 : index
      %c0_7 = arith.constant 0 : index
      %15 = vector.load %arg6[%c0_6, %c0_7] : memref<256x128xbf16, #tpu.memory_space<vmem>>, vector<256x128xbf16>
      %cst_8 = arith.constant dense<0.000000e+00> : vector<128x128xf32>
      %16 = tpu.matmul %14, %15, %cst_8 {dimension_numbers = #tpu.dot_dimension_numbers<[1], [0], [0], [1], [0, 0, 1, 1], [], []>} : vector<128x256xbf16>, vector<256x128xbf16>, vector<128x128xf32> -> vector<128x128xf32>
      %c0_9 = arith.constant 0 : index
      %c0_10 = arith.constant 0 : index
      %17 = vector.load %arg7[%c0_9, %c0_10] : memref<1x128xf32, #tpu.memory_space<vmem>>, vector<1x128xf32>
      %18 = vector.broadcast %17 : vector<1x128xf32> to vector<128x128xf32>
      %19 = arith.addf %16, %18 : vector<128x128xf32>
      %c0_11 = arith.constant 0 : index
      %c0_12 = arith.constant 0 : index
      %20 = vector.load %arg8[%c0_11, %c0_12] : memref<128x128xf32, #tpu.memory_space<vmem>>, vector<128x128xf32>
      tpu.vector_store %arg8[%c0_11, %c0_12], %19 {strides = array<i32>} : memref<128x128xf32, #tpu.memory_space<vmem>>, vector<128x128xf32>,
    } else {
    }
    return
  }
  func.func @transform_0(%arg0: i32, %arg1: i32) -> (i32, i32) {
    %c0_i32 = arith.constant 0 : i32
    %c0_i32_0 = arith.constant 0 : i32
    return %arg1, %c0_i32 : i32, i32
  }
  func.func @transform_1(%arg0: i32, %arg1: i32) -> (i32, i32) {
    %c0_i32 = arith.constant 0 : i32
    %c0_i32_0 = arith.constant 0 : i32
    %c0_i32_1 = arith.constant 0 : i32
    return %c0_i32, %c0_i32_0 : i32, i32
  }
  func.func @transform_2(%arg0: i32, %arg1: i32) -> (i32, i32) {
    %c0_i32 = arith.constant 0 : i32
    %c0_i32_0 = arith.constant 0 : i32
    %c0_i32_1 = arith.constant 0 : i32
    return %c0_i32, %c0_i32_0 : i32, i32
  }
  func.func @transform_3(%arg0: i32, %arg1: i32) -> (i32, i32) {
    %c0_i32 = arith.constant 0 : i32
    %c0_i32_0 = arith.constant 0 : i32
    %c0_i32_1 = arith.constant 0 : i32
    return %c0_i32, %c0_i32_0 : i32, i32
  }
  func.func @transform_4(%arg0: i32, %arg1: i32) -> (i32, i32) {
    %c0_i32 = arith.constant 0 : i32
    %c0_i32_0 = arith.constant 0 : i32
    %c0_i32_1 = arith.constant 0 : i32
    return %c0_i32, %c0_i32_0 : i32, i32
  }
  func.func @transform_5(%arg0: i32, %arg1: i32) -> (i32, i32) {
    %c0_i32 = arith.constant 0 : i32
    %c0_i32_0 = arith.constant 0 : i32
    %c0_i32_1 = arith.constant 0 : i32
    return %c0_i32, %c0_i32_0 : i32, i32
  }
  func.func @transform_6(%arg0: i32, %arg1: i32) -> (i32, i32) {
    %c0_i32 = arith.constant 0 : i32
    %c0_i32_0 = arith.constant 0 : i32
    return %arg1, %c0_i32 : i32, i32
  }
}

</mosaic_0001>

<llo_original>
// kernel: sage_forward.1
$region0: #{sage_forward.1}
  #allocation0 [shape = 'u32[]', space=smem, size = 0x4, offset = 0x4, fixed_abs, tag = 'smem constant byte address 0x4 - core index']
  #allocation1 [shape = 'u32[144,128]{1,0:T(1,128)}', space=vmem, size = 0x12000, scoped, tag = 'internal scratch']
  #allocation2 [shape = 'bf16[128,128]{1,0:T(16,128)(2,1)}', space=vmem, size = 0x8000, scoped, tag = 'scratch operand']
  %s0 = inlined_call_operand.hbm [shape: bf16[128,128], index: 0, kind: input, shape index: {}]
  %s1 = inlined_call_operand.hbm [shape: bf16[128,128], index: 1, kind: input, shape index: {}]
  %s2 = inlined_call_operand.hbm [shape: bf16[256,128], index: 2, kind: input, shape index: {}]
  %s3 = inlined_call_operand.hbm [shape: f32[1,128], index: 3, kind: input, shape index: {}]
  %s4 = inlined_call_operand.hbm [shape: bf16[256,128], index: 4, kind: input, shape index: {}]
  %s5 = inlined_call_operand.hbm [shape: f32[1,128], index: 5, kind: input, shape index: {}]
  %s6 = inlined_call_operand.hbm [shape: f32[128,128], index: 6, kind: output, shape index: {}]
  %s7 = sld [smem:[#allocation0]]
  $region89: #{sage_forward.1} parent=0
    _
  %s9 = ssub.s32 1, %s7
  %s10 = scalar_select 0, %s9, %s7
  $region1: #{sage_forward.1} parent=0
    #allocation3 [shape = 'u8[32768]{0}', space=vmem, size = 0x8000, scoped, tag = 'input window, operand 0, single buffered']
    #allocation4 [shape = 's32[2]{0}', space=sflag, size = 0x8, scoped, tag = 'scoped memory for sage_forward.1']
    #allocation5 [shape = 's32[2]{0}', space=sflag, size = 0x8, scoped, tag = 'scoped memory for sage_forward.1']
    #allocation6 [shape = 'u8[32768]{0}', space=vmem, size = 0x8000, scoped, tag = 'input window, operand 1, single buffered']
    #allocation7 [shape = 's32[1]{0}', space=sflag, size = 0x4, scoped, tag = 'scoped memory for sage_forward.1']
    #allocation8 [shape = 'u8[65536]{0}', space=vmem, size = 0x10000, scoped, tag = 'input window, operand 2, single buffered']
    #allocation9 [shape = 'u8[512]{0}', space=vmem, size = 0x400, scoped, tag = 'input window, operand 3, single buffered']
    #allocation10 [shape = 's32[1]{0}', space=sflag, size = 0x4, scoped, tag = 'scoped memory for sage_forward.1']
    #allocation11 [shape = 'u8[65536]{0}', space=vmem, size = 0x10000, scoped, tag = 'input window, operand 4, single buffered']
    #allocation12 [shape = 'u8[512]{0}', space=vmem, size = 0x400, scoped, tag = 'input window, operand 5, single buffered']
    #allocation13 [shape = 's32[1]{0}', space=sflag, size = 0x4, scoped, tag = 'scoped memory for sage_forward.1']
    #allocation14 [shape = 'u8[65536]{0}', space=vmem, size = 0x10000, scoped, tag = 'output window, operand 0, single buffered']
    %11 = vsyncpa [#allocation4], 0
    %12 = vsyncpa [#allocation7], 0
    %13 = vsyncpa [#allocation10], 0
    %14 = vsyncpa [#allocation13], 0
    %15 = vsyncpa [#allocation5], 0
    loop: start=0, step=1, limit=4
    $region2: #{sage_forward.1} parent=1 // loop_pre_header
      _
    $region3: #{sage_forward.1} parent=1 // loop_header
      %s17 = sphi 0, %s21
      %p18 = scmp.ge.s32.totalorder %s17, 4
      %s24 = sphi 0, %s36
      %s25 = sphi 0, %s32
      %s26 = sphi 0, %s24
      %s27 = sphi 0, %s25
      %s28 = sphi 0, %s26
      %s29 = sphi 0, %s27
      %s39 = sphi 0, %s41
      %s42 = sphi 0, %s39
      %s43 = sphi 0, %s42
      %s59 = sphi 0, %s43
      %s63 = sphi 0, %s63
      %s65 = sphi 0, %s63
      %s66 = sphi 0, %s65
      %s80 = sphi 0, %s66
      %s84 = sphi 0, %s84
      %s86 = sphi 0, %s84
      %s87 = sphi 0, %s86
      %s101 = sphi 0, %s87
      %s105 = sphi 0, %s105
      %s107 = sphi 0, %s105
      %s108 = sphi 0, %s107
      %s122 = sphi 0, %s108
      %s126 = sphi 0, %s126
      %s128 = sphi 0, %s126
      %s129 = sphi 0, %s128
      %s143 = sphi 0, %s129
      %s147 = sphi 0, %s147
      %s149 = sphi 0, %s147
      %s150 = sphi 0, %s149
      %s164 = sphi 0, %s150
      %s170 = sphi 0, %s172
      %s173 = sphi 0, %s170
      %s174 = sphi 0, %s173
      %s190 = sphi 0, %s174
    $region4: #{sage_forward.1} parent=1 // loop_header_branch
      %20 = sbr.rel (%p18) target = $region8
    $region5: #{sage_forward.1} parent=1 // loop_body
      %s22 = ssub.s32 %s17, 1
      %s23 = ssub.s32 %s17, 2
      %s30 = sadd.s32 1, %s25
      %p31 = scmp.ge.s32.totalorder %s30, 1
      %s32 = scalar_select %p31, 0, %s30
      %s33 = sadd.s32 1, %s24
      %s34 = scalar_select %p31, %s33, %s24
      %p35 = scmp.ge.s32.totalorder %s34, 2
      %s36 = scalar_select %p35, 0, %s34
      %s37 = ssub.s32 %s25, %s32
      %p38 = scmp.eq.s32.totalorder %s37, 0
      %s40 = sadd.s32 %s39, 1
      %s41 = scalar_select %p38, %s39, %s40
      %p44 = pneg %p38
      %p45 = scmp.eq.s32.totalorder %s17, 1
      %p46 = por %p44, %p45
      %p47 = scmp.ne.s32.totalorder %s39, %s42
      %p48 = scmp.eq.s32.totalorder %s17, 0
      %p49 = por %p47, %p48
      %p50 = scmp.ne.s32.totalorder %s39, %s42
      %p51 = scmp.eq.s32.totalorder %s22, 1
      %p52 = por %p50, %p51
      %p53 = scmp.ne.s32.totalorder %s42, %s43
      %p54 = scmp.eq.s32.totalorder %s22, 0
      %p55 = por %p53, %p54
      %p56 = scmp.ne.s32.totalorder %s42, %s43
      %p57 = scmp.eq.s32.totalorder %s23, 1
      %p58 = por %p56, %p57
      %p60 = scmp.ne.s32.totalorder %s43, %s59
      %p61 = scmp.eq.s32.totalorder %s23, 0
      %p62 = por %p60, %p61
      %s64 = sadd.s32 %s63, 1
      %p67 = scmp.eq.s32.totalorder %s17, 1
      %p68 = scmp.ne.s32.totalorder %s63, %s65
      %p69 = scmp.eq.s32.totalorder %s17, 0
      %p70 = por %p68, %p69
      %p71 = scmp.ne.s32.totalorder %s63, %s65
      %p72 = scmp.eq.s32.totalorder %s22, 1
      %p73 = por %p71, %p72
      %p74 = scmp.ne.s32.totalorder %s65, %s66
      %p75 = scmp.eq.s32.totalorder %s22, 0
      %p76 = por %p74, %p75
      %p77 = scmp.ne.s32.totalorder %s65, %s66
      %p78 = scmp.eq.s32.totalorder %s23, 1
      %p79 = por %p77, %p78
      %p81 = scmp.ne.s32.totalorder %s66, %s80
      %p82 = scmp.eq.s32.totalorder %s23, 0
      %p83 = por %p81, %p82
      %s85 = sadd.s32 %s84, 1
      %p88 = scmp.eq.s32.totalorder %s17, 1
      %p89 = scmp.ne.s32.totalorder %s84, %s86
      %p90 = scmp.eq.s32.totalorder %s17, 0
      %p91 = por %p89, %p90
      %p92 = scmp.ne.s32.totalorder %s84, %s86
      %p93 = scmp.eq.s32.totalorder %s22, 1
      %p94 = por %p92, %p93
      %p95 = scmp.ne.s32.totalorder %s86, %s87
      %p96 = scmp.eq.s32.totalorder %s22, 0
      %p97 = por %p95, %p96
      %p98 = scmp.ne.s32.totalorder %s86, %s87
      %p99 = scmp.eq.s32.totalorder %s23, 1
      %p100 = por %p98, %p99
      %p102 = scmp.ne.s32.totalorder %s87, %s101
      %p103 = scmp.eq.s32.totalorder %s23, 0
      %p104 = por %p102, %p103
      %s106 = sadd.s32 %s105, 1
      %p109 = scmp.eq.s32.totalorder %s17, 1
      %p110 = scmp.ne.s32.totalorder %s105, %s107
      %p111 = scmp.eq.s32.totalorder %s17, 0
      %p112 = por %p110, %p111
      %p113 = scmp.ne.s32.totalorder %s105, %s107
      %p114 = scmp.eq.s32.totalorder %s22, 1
      %p115 = por %p113, %p114
      %p116 = scmp.ne.s32.totalorder %s107, %s108
      %p117 = scmp.eq.s32.totalorder %s22, 0
      %p118 = por %p116, %p117
      %p119 = scmp.ne.s32.totalorder %s107, %s108
      %p120 = scmp.eq.s32.totalorder %s23, 1
      %p121 = por %p119, %p120
      %p123 = scmp.ne.s32.totalorder %s108, %s122
      %p124 = scmp.eq.s32.totalorder %s23, 0
      %p125 = por %p123, %p124
      %s127 = sadd.s32 %s126, 1
      %p130 = scmp.eq.s32.totalorder %s17, 1
      %p131 = scmp.ne.s32.totalorder %s126, %s128
      %p132 = scmp.eq.s32.totalorder %s17, 0
      %p133 = por %p131, %p132
      %p134 = scmp.ne.s32.totalorder %s126, %s128
      %p135 = scmp.eq.s32.totalorder %s22, 1
      %p136 = por %p134, %p135
      %p137 = scmp.ne.s32.totalorder %s128, %s129
      %p138 = scmp.eq.s32.totalorder %s22, 0
      %p139 = por %p137, %p138
      %p140 = scmp.ne.s32.totalorder %s128, %s129
      %p141 = scmp.eq.s32.totalorder %s23, 1
      %p142 = por %p140, %p141
      %p144 = scmp.ne.s32.totalorder %s129, %s143
      %p145 = scmp.eq.s32.totalorder %s23, 0
      %p146 = por %p144, %p145
      %s148 = sadd.s32 %s147, 1
      %p151 = scmp.eq.s32.totalorder %s17, 1
      %p152 = scmp.ne.s32.totalorder %s147, %s149
      %p153 = scmp.eq.s32.totalorder %s17, 0
      %p154 = por %p152, %p153
      %p155 = scmp.ne.s32.totalorder %s147, %s149
      %p156 = scmp.eq.s32.totalorder %s22, 1
      %p157 = por %p155, %p156
      %p158 = scmp.ne.s32.totalorder %s149, %s150
      %p159 = scmp.eq.s32.totalorder %s22, 0
      %p160 = por %p158, %p159
      %p161 = scmp.ne.s32.totalorder %s149, %s150
      %p162 = scmp.eq.s32.totalorder %s23, 1
      %p163 = por %p161, %p162
      %p165 = scmp.ne.s32.totalorder %s150, %s164
      %p166 = scmp.eq.s32.totalorder %s23, 0
      %p167 = por %p165, %p166
      %s168 = ssub.s32 %s25, %s32
      %p169 = scmp.eq.s32.totalorder %s168, 0
      %s171 = sadd.s32 %s170, 1
      %s172 = scalar_select %p169, %s170, %s171
      %p175 = pneg %p169
      %p176 = scmp.eq.s32.totalorder %s17, 1
      %p177 = por %p175, %p176
      %p178 = scmp.ne.s32.totalorder %s170, %s173
      %p179 = scmp.eq.s32.totalorder %s17, 0
      %p180 = por %p178, %p179
      %p181 = scmp.ne.s32.totalorder %s170, %s173
      %p182 = scmp.eq.s32.totalorder %s22, 1
      %p183 = por %p181, %p182
      %p184 = scmp.ne.s32.totalorder %s173, %s174
      %p185 = scmp.eq.s32.totalorder %s22, 0
      %p186 = por %p184, %p185
      %p187 = scmp.ne.s32.totalorder %s173, %s174
      %p188 = scmp.eq.s32.totalorder %s23, 1
      %p189 = por %p187, %p188
      %p191 = scmp.ne.s32.totalorder %s174, %s190
      %p192 = scmp.eq.s32.totalorder %s23, 0
      %p193 = por %p191, %p192
      %p194 = scmp.le.s32.totalorder 1, %s17
      %p195 = scmp.lt.s32.totalorder %s17, 3
      %p196 = pnand %p194, %p195
      %p197 = pneg %p196
      // Predicated region
      $region9: #{sage_forward.1} parent=5 // pred_check
        _
      $region10: #{sage_forward.1} parent=5 // pred_check_branch
        %199 = sbr.rel (%p196) target = $region12
      $region11: #{sage_forward.1} parent=5 // pred_region
        %s200 = ssub.s32 %s17, 1
        // Predicated region
        $region13: #{sage_forward.1} parent=11 // pred_check
          %p201 = pneg %p55
        $region14: #{sage_forward.1} parent=11 // pred_check_branch
          %203 = sbr.rel (%p201) target = $region16
        $region15: #{sage_forward.1} parent=11 // pred_region
          %s204 = smul.u32 16, %s27
          %s206 = ssub.s32 1024, 1024
          %207 = vsyncadd [#allocation4], %s206
          %s208 = smul.addr %s204, 64
          %s209 = scalar_lea.hbm %s0, %s208
          %s210 = sshll.u32 [#allocation3], 4
          %s211 = int_to_ptr.vmem [resolvable:$true] %s210
          %216 = dma.hbm_to_vmem [thread:$0]  %s209, 1024, %s211, [#allocation4], 64, 64, 4
        $region16: #{sage_forward.1} parent=11 // pred_fallthru
          _
        // Predicated region
        $region17: #{sage_forward.1} parent=11 // pred_check
          %p217 = pneg %p76
        $region18: #{sage_forward.1} parent=11 // pred_check_branch
          %219 = sbr.rel (%p217) target = $region20
        $region19: #{sage_forward.1} parent=11 // pred_region
          %s221 = ssub.s32 1024, 1024
          %222 = vsyncadd [#allocation7], %s221
          %s223 = sshll.u32 [#allocation6], 4
          %s224 = int_to_ptr.vmem [resolvable:$true] %s223
          %229 = dma.hbm_to_vmem [thread:$0]  %s1, 1024, %s224, [#allocation7], 64, 64, 4
        $region20: #{sage_forward.1} parent=11 // pred_fallthru
          _
        // Predicated region
        $region21: #{sage_forward.1} parent=11 // pred_check
          %p230 = pneg %p97
        $region22: #{sage_forward.1} parent=11 // pred_check_branch
          %232 = sbr.rel (%p230) target = $region24
        $region23: #{sage_forward.1} parent=11 // pred_region
          %s234 = ssub.s32 2048, 2048
          %235 = vsyncadd [#allocation7], %s234
          %s236 = sshll.u32 [#allocation8], 4
          %s237 = int_to_ptr.vmem [resolvable:$true] %s236
          %242 = dma.hbm_to_vmem [thread:$0]  %s2, 2048, %s237, [#allocation7], 64, 64, 4
        $region24: #{sage_forward.1} parent=11 // pred_fallthru
          _
        // Predicated region
        $region25: #{sage_forward.1} parent=11 // pred_check
          %p243 = pneg %p118
        $region26: #{sage_forward.1} parent=11 // pred_check_branch
          %245 = sbr.rel (%p243) target = $region28
        $region27: #{sage_forward.1} parent=11 // pred_region
          %s247 = ssub.s32 16, 16
          %248 = vsyncadd [#allocation10], %s247
          %s250 = sshll.u32 [#allocation9], 4
          %s251 = int_to_ptr.vmem [resolvable:$true] %s250
          %253 = dma.hbm_to_vmem [thread:$0]  %s3, 16, %s251, [#allocation10]
        $region28: #{sage_forward.1} parent=11 // pred_fallthru
          _
        // Predicated region
        $region29: #{sage_forward.1} parent=11 // pred_check
          %p254 = pneg %p139
        $region30: #{sage_forward.1} parent=11 // pred_check_branch
          %256 = sbr.rel (%p254) target = $region32
        $region31: #{sage_forward.1} parent=11 // pred_region
          %s258 = ssub.s32 2048, 2048
          %259 = vsyncadd [#allocation10], %s258
          %s260 = sshll.u32 [#allocation11], 4
          %s261 = int_to_ptr.vmem [resolvable:$true] %s260
          %266 = dma.hbm_to_vmem [thread:$0]  %s4, 2048, %s261, [#allocation10], 64, 64, 4
        $region32: #{sage_forward.1} parent=11 // pred_fallthru
          _
        // Predicated region
        $region33: #{sage_forward.1} parent=11 // pred_check
          %p267 = pneg %p160
        $region34: #{sage_forward.1} parent=11 // pred_check_branch
          %269 = sbr.rel (%p267) target = $region36
        $region35: #{sage_forward.1} parent=11 // pred_region
          %s271 = ssub.s32 16, 16
          %272 = vsyncadd [#allocation13], %s271
          %s274 = sshll.u32 [#allocation12], 4
          %s275 = int_to_ptr.vmem [resolvable:$true] %s274
          %277 = dma.hbm_to_vmem [thread:$0]  %s5, 16, %s275, [#allocation13]
        $region36: #{sage_forward.1} parent=11 // pred_fallthru
          _
      $region12: #{sage_forward.1} parent=5 // pred_fallthru
        _
      %p278 = scmp.lt.s32.totalorder %s17, 2
      // Predicated region
      $region37: #{sage_forward.1} parent=5 // pred_check
        %p279 = pneg %p278
      $region38: #{sage_forward.1} parent=5 // pred_check_branch
        %281 = sbr.rel (%p279) target = $region40
      $region39: #{sage_forward.1} parent=5 // pred_region
        _
      $region40: #{sage_forward.1} parent=5 // pred_fallthru
        _
      %p282 = scmp.le.s32.totalorder 1, %s17
      %p283 = scmp.lt.s32.totalorder %s17, 3
      %p284 = pnand %p282, %p283
      %p285 = pneg %p284
      // Predicated region
      $region41: #{sage_forward.1} parent=5 // pred_check
        _
      $region42: #{sage_forward.1} parent=5 // pred_check_branch
        %287 = sbr.rel (%p284) target = $region44
      $region43: #{sage_forward.1} parent=5 // pred_region
        %s288 = ssub.s32 %s17, 1
        // Predicated region
        $region45: #{sage_forward.1} parent=43 // pred_check
          %p289 = pneg %p55
        $region46: #{sage_forward.1} parent=43 // pred_check_branch
          %291 = sbr.rel (%p289) target = $region48
        $region47: #{sage_forward.1} parent=43 // pred_region
          %292 = dma.done [#allocation4], 1024
        $region48: #{sage_forward.1} parent=43 // pred_fallthru
          _
        // Predicated region
        $region49: #{sage_forward.1} parent=43 // pred_check
          %p293 = pneg %p76
        $region50: #{sage_forward.1} parent=43 // pred_check_branch
          %295 = sbr.rel (%p293) target = $region52
        $region51: #{sage_forward.1} parent=43 // pred_region
          %296 = dma.done [#allocation7], 1024
        $region52: #{sage_forward.1} parent=43 // pred_fallthru
          _
        // Predicated region
        $region53: #{sage_forward.1} parent=43 // pred_check
          %p297 = pneg %p97
        $region54: #{sage_forward.1} parent=43 // pred_check_branch
          %299 = sbr.rel (%p297) target = $region56
        $region55: #{sage_forward.1} parent=43 // pred_region
          %300 = dma.done [#allocation7], 2048
        $region56: #{sage_forward.1} parent=43 // pred_fallthru
          _
        // Predicated region
        $region57: #{sage_forward.1} parent=43 // pred_check
          %p301 = pneg %p118
        $region58: #{sage_forward.1} parent=43 // pred_check_branch
          %303 = sbr.rel (%p301) target = $region60
        $region59: #{sage_forward.1} parent=43 // pred_region
          %304 = dma.done [#allocation10], 16
        $region60: #{sage_forward.1} parent=43 // pred_fallthru
          _
        // Predicated region
        $region61: #{sage_forward.1} parent=43 // pred_check
          %p305 = pneg %p139
        $region62: #{sage_forward.1} parent=43 // pred_check_branch
          %307 = sbr.rel (%p305) target = $region64
        $region63: #{sage_forward.1} parent=43 // pred_region
          %308 = dma.done [#allocation10], 2048
        $region64: #{sage_forward.1} parent=43 // pred_fallthru
          _
        // Predicated region
        $region65: #{sage_forward.1} parent=43 // pred_check
          %p309 = pneg %p160
        $region66: #{sage_forward.1} parent=43 // pred_check_branch
          %311 = sbr.rel (%p309) target = $region68
        $region67: #{sage_forward.1} parent=43 // pred_region
          %312 = dma.done [#allocation13], 16
        $region68: #{sage_forward.1} parent=43 // pred_fallthru
          _
        %p313 = pneg %p55
        %p314 = pneg %p52
        %p315 = pneg %p76
        %p316 = pneg %p73
        %p317 = pneg %p97
        %p318 = pneg %p94
        %p319 = pneg %p118
        %p320 = pneg %p115
        %p321 = pneg %p139
        %p322 = pneg %p136
        %p323 = pneg %p160
        %p324 = pneg %p157
        %p325 = pneg %p186
        %p326 = pneg %p183
        %s327 = smul.u32 16, %s27
        %s328 = smul.u32 16, %s27
        %s330 = smul.u32 %s27, 128
        %p331 = scmp.eq.s32.totalorder %s26, 0
        // Predicated region
        $region69: #{sage_forward.1} parent=43 // pred_check
          %p332 = pneg %p331
        $region70: #{sage_forward.1} parent=43 // pred_check_branch
          %334 = sbr.rel (%p332) target = $region72
        $region71: #{sage_forward.1} parent=43 // pred_region
          %v335 = vld [vmem:[#allocation3] sm:$0xf]
          %v336 = vld [vmem:[#allocation3 + $0x4] sm:$0xf]
          %v337 = vld [vmem:[#allocation3 + $0x8] sm:$0xf]
          %v338 = vld [vmem:[#allocation3 + $0xc] sm:$0xf]
          %v339 = vld [vmem:[#allocation3 + $0x10] sm:$0xf]
          %v340 = vld [vmem:[#allocation3 + $0x14] sm:$0xf]
          %v341 = vld [vmem:[#allocation3 + $0x18] sm:$0xf]
          %v342 = vld [vmem:[#allocation3 + $0x1c] sm:$0xf]
          %v343 = vld [vmem:[#allocation3 + $0x20] sm:$0xf]
          %v344 = vld [vmem:[#allocation3 + $0x24] sm:$0xf]
          %v345 = vld [vmem:[#allocation3 + $0x28] sm:$0xf]
          %v346 = vld [vmem:[#allocation3 + $0x2c] sm:$0xf]
          %v347 = vld [vmem:[#allocation3 + $0x30] sm:$0xf]
          %v348 = vld [vmem:[#allocation3 + $0x34] sm:$0xf]
          %v349 = vld [vmem:[#allocation3 + $0x38] sm:$0xf]
          %v350 = vld [vmem:[#allocation3 + $0x3c] sm:$0xf]
          %v351 = vld [vmem:[#allocation6] sm:$0xf]
          %v352 = vld [vmem:[#allocation6 + $0x4] sm:$0xf]
          %v353 = vld [vmem:[#allocation6 + $0x8] sm:$0xf]
          %v354 = vld [vmem:[#allocation6 + $0xc] sm:$0xf]
          %v355 = vld [vmem:[#allocation6 + $0x10] sm:$0xf]
          %v356 = vld [vmem:[#allocation6 + $0x14] sm:$0xf]
          %v357 = vld [vmem:[#allocation6 + $0x18] sm:$0xf]
          %v358 = vld [vmem:[#allocation6 + $0x1c] sm:$0xf]
          %v359 = vld [vmem:[#allocation6 + $0x20] sm:$0xf]
          %v360 = vld [vmem:[#allocation6 + $0x24] sm:$0xf]
          %v361 = vld [vmem:[#allocation6 + $0x28] sm:$0xf]
          %v362 = vld [vmem:[#allocation6 + $0x2c] sm:$0xf]
          %v363 = vld [vmem:[#allocation6 + $0x30] sm:$0xf]
          %v364 = vld [vmem:[#allocation6 + $0x34] sm:$0xf]
          %v365 = vld [vmem:[#allocation6 + $0x38] sm:$0xf]
          %v366 = vld [vmem:[#allocation6 + $0x3c] sm:$0xf]
          %v383 = vunpack.c.l.b16 %v335
          %v384 = vunpack.c.l.b16 %v336
          %v385 = vunpack.c.l.b16 %v337
          %v386 = vunpack.c.l.b16 %v338
          %v387 = vunpack.c.l.b16 %v339
          %v388 = vunpack.c.l.b16 %v340
          %v389 = vunpack.c.l.b16 %v341
          %v390 = vunpack.c.l.b16 %v342
          %v391 = vunpack.c.l.b16 %v343
          %v392 = vunpack.c.l.b16 %v344
          %v393 = vunpack.c.l.b16 %v345
          %v394 = vunpack.c.l.b16 %v346
          %v395 = vunpack.c.l.b16 %v347
          %v396 = vunpack.c.l.b16 %v348
          %v397 = vunpack.c.l.b16 %v349
          %v398 = vunpack.c.l.b16 %v350
          %v399 = vpack.c.b16 %v384, %v383
          %v400 = vpack.c.b16 %v386, %v385
          %v401 = vpack.c.b16 %v388, %v387
          %v402 = vpack.c.b16 %v390, %v389
          %v403 = vpack.c.b16 %v392, %v391
          %v404 = vpack.c.b16 %v394, %v393
          %v405 = vpack.c.b16 %v396, %v395
          %v406 = vpack.c.b16 %v398, %v397
          %v431 = vunpack.c.l.b16 %v351
          %v432 = vunpack.c.l.b16 %v352
          %v433 = vunpack.c.l.b16 %v353
          %v434 = vunpack.c.l.b16 %v354
          %v435 = vunpack.c.l.b16 %v355
          %v436 = vunpack.c.l.b16 %v356
          %v437 = vunpack.c.l.b16 %v357
          %v438 = vunpack.c.l.b16 %v358
          %v439 = vunpack.c.l.b16 %v359
          %v440 = vunpack.c.l.b16 %v360
          %v441 = vunpack.c.l.b16 %v361
          %v442 = vunpack.c.l.b16 %v362
          %v443 = vunpack.c.l.b16 %v363
          %v444 = vunpack.c.l.b16 %v364
          %v445 = vunpack.c.l.b16 %v365
          %v446 = vunpack.c.l.b16 %v366
          %v447 = vpack.c.b16 %v432, %v431
          %v448 = vpack.c.b16 %v434, %v433
          %v449 = vpack.c.b16 %v436, %v435
          %v450 = vpack.c.b16 %v438, %v437
          %v451 = vpack.c.b16 %v440, %v439
          %v452 = vpack.c.b16 %v442, %v441
          %v453 = vpack.c.b16 %v444, %v443
          %v454 = vpack.c.b16 %v446, %v445
          %463 = vmatprep.subr.bf16.mxu0 0
          %464 = vmatpush1.bf16.msra.mxu0 %v447
          %465 = vmatprep.subr.bf16.mxu0 0
          %466 = vmatpush1.bf16.msra.mxu0 %v448
          %467 = vmatprep.subr.bf16.mxu0 0
          %468 = vmatpush1.bf16.msra.mxu0 %v449
          %469 = vmatprep.subr.bf16.mxu0 0
          %470 = vmatpush1.bf16.msra.mxu0 %v450
          %471 = vmatprep.subr.bf16.mxu0 0
          %472 = vmatpush1.bf16.msra.mxu0 %v451
          %473 = vmatprep.subr.bf16.mxu0 0
          %474 = vmatpush1.bf16.msra.mxu0 %v452
          %475 = vmatprep.subr.bf16.mxu0 0
          %476 = vmatpush1.bf16.msra.mxu0 %v453
          %477 = vmatprep.subr.bf16.mxu0 0
          %478 = vmatpush1.bf16.msra.mxu0 %v454
          %479 = vmatprep.subr.bf16.mxu0 0
          %480 = vmatpush1.bf16.msra.mxu0 0
          %481 = vmatprep.subr.bf16.mxu0 0
          %482 = vmatpush1.bf16.msra.mxu0 0
          %483 = vmatprep.subr.bf16.mxu0 0
          %484 = vmatpush1.bf16.msra.mxu0 0
          %485 = vmatprep.subr.bf16.mxu0 0
          %486 = vmatpush1.bf16.msra.mxu0 0
          %487 = vmatprep.subr.bf16.mxu0 0
          %488 = vmatpush1.bf16.msra.mxu0 0
          %489 = vmatprep.subr.bf16.mxu0 0
          %490 = vmatpush1.bf16.msra.mxu0 0
          %491 = vmatprep.subr.bf16.mxu0 0
          %492 = vmatpush1.bf16.msra.mxu0 0
          %493 = vmatprep.subr.bf16.mxu0 0
          %494 = vmatpush1.bf16.msra.mxu0 0
          %495 = vmatprep.mubr.bf16.mxu0 0
          %496 = vmatmul.mubr.bf16.gmra.mrb[0].mxu0 %v399
          %v497 = vpop.f32.mrb[0].mxu0
          %v498 = vadd.f32 0.0, %v497
          %v499 = vpop.f32.mrb[0].mxu0
          %v500 = vpop.f32.mrb[0].mxu0
          %v501 = vadd.f32 0.0, %v500
          %v502 = vpop.f32.mrb[0].mxu0
          %503 = vmatprep.mubr.bf16.mxu0 0
          %504 = vmatmul.mubr.bf16.gmra.mrb[0].mxu0 %v400
          %v505 = vpop.f32.mrb[0].mxu0
          %v506 = vadd.f32 0.0, %v505
          %v507 = vpop.f32.mrb[0].mxu0
          %v508 = vpop.f32.mrb[0].mxu0
          %v509 = vadd.f32 0.0, %v508
          %v510 = vpop.f32.mrb[0].mxu0
          %511 = vmatprep.mubr.bf16.mxu0 0
          %512 = vmatmul.mubr.bf16.gmra.mrb[0].mxu0 %v401
          %v513 = vpop.f32.mrb[0].mxu0
          %v514 = vadd.f32 0.0, %v513
          %v515 = vpop.f32.mrb[0].mxu0
          %v516 = vpop.f32.mrb[0].mxu0
          %v517 = vadd.f32 0.0, %v516
          %v518 = vpop.f32.mrb[0].mxu0
          %519 = vmatprep.mubr.bf16.mxu0 0
          %520 = vmatmul.mubr.bf16.gmra.mrb[0].mxu0 %v402
          %v521 = vpop.f32.mrb[0].mxu0
          %v522 = vadd.f32 0.0, %v521
          %v523 = vpop.f32.mrb[0].mxu0
          %v524 = vpop.f32.mrb[0].mxu0
          %v525 = vadd.f32 0.0, %v524
          %v526 = vpop.f32.mrb[0].mxu0
          %527 = vmatprep.mubr.bf16.mxu0 0
          %528 = vmatmul.mubr.bf16.gmra.mrb[0].mxu0 %v403
          %v529 = vpop.f32.mrb[0].mxu0
          %v530 = vadd.f32 0.0, %v529
          %v531 = vpop.f32.mrb[0].mxu0
          %v532 = vpop.f32.mrb[0].mxu0
          %v533 = vadd.f32 0.0, %v532
          %v534 = vpop.f32.mrb[0].mxu0
          %535 = vmatprep.mubr.bf16.mxu0 0
          %536 = vmatmul.mubr.bf16.gmra.mrb[0].mxu0 %v404
          %v537 = vpop.f32.mrb[0].mxu0
          %v538 = vadd.f32 0.0, %v537
          %v539 = vpop.f32.mrb[0].mxu0
          %v540 = vpop.f32.mrb[0].mxu0
          %v541 = vadd.f32 0.0, %v540
          %v542 = vpop.f32.mrb[0].mxu0
          %543 = vmatprep.mubr.bf16.mxu0 0
          %544 = vmatmul.mubr.bf16.gmra.mrb[0].mxu0 %v405
          %v545 = vpop.f32.mrb[0].mxu0
          %v546 = vadd.f32 0.0, %v545
          %v547 = vpop.f32.mrb[0].mxu0
          %v548 = vpop.f32.mrb[0].mxu0
          %v549 = vadd.f32 0.0, %v548
          %v550 = vpop.f32.mrb[0].mxu0
          %551 = vmatprep.mubr.bf16.mxu0 0
          %552 = vmatmul.mubr.bf16.gmra.mrb[0].mxu0 %v406
          %v553 = vpop.f32.mrb[0].mxu0
          %v554 = vadd.f32 0.0, %v553
          %v555 = vpop.f32.mrb[0].mxu0
          %v556 = vpop.f32.mrb[0].mxu0
          %v557 = vadd.f32 0.0, %v556
          %v558 = vpop.f32.mrb[0].mxu0
          %559 = vdwg.mxu0
          %s560 = sshra.s32 %s330, 3
          %s561 = sand.u32 %s330, 7
          %s562 = smul.addr %s560, 4
          %s563 = scalar_lea.vmem [#allocation6], %s562
          %v564 = vld [vmem:[%s563] sm:$0xf]
          %v565 = vld [vmem:[%s563 + $0x4] sm:$0xf]
          %v566 = vld [vmem:[%s563 + $0x8] sm:$0xf]
          %v567 = vld [vmem:[%s563 + $0xc] sm:$0xf]
          %v568 = vld [vmem:[%s563 + $0x10] sm:$0xf]
          %v569 = vld [vmem:[%s563 + $0x14] sm:$0xf]
          %v570 = vld [vmem:[%s563 + $0x18] sm:$0xf]
          %v571 = vld [vmem:[%s563 + $0x1c] sm:$0xf]
          %v572 = vld [vmem:[%s563 + $0x20] sm:$0xf]
          %v573 = vld [vmem:[%s563 + $0x24] sm:$0xf]
          %v574 = vld [vmem:[%s563 + $0x28] sm:$0xf]
          %v575 = vld [vmem:[%s563 + $0x2c] sm:$0xf]
          %v576 = vld [vmem:[%s563 + $0x30] sm:$0xf]
          %v577 = vld [vmem:[%s563 + $0x34] sm:$0xf]
          %v578 = vld [vmem:[%s563 + $0x38] sm:$0xf]
          %v579 = vld [vmem:[%s563 + $0x3c] sm:$0xf]
          %v580 = vpack.c.bf16 %v501, %v498
          %v581 = vpack.c.bf16 %v509, %v506
          %v582 = vpack.c.bf16 %v517, %v514
          %v583 = vpack.c.bf16 %v525, %v522
          %v584 = vpack.c.bf16 %v533, %v530
          %v585 = vpack.c.bf16 %v541, %v538
          %v586 = vpack.c.bf16 %v549, %v546
          %v587 = vpack.c.bf16 %v557, %v554
          %v604 = vunpack.c.l.b16 %v564
          %v605 = vunpack.c.l.b16 %v565
          %v606 = vunpack.c.l.b16 %v566
          %v607 = vunpack.c.l.b16 %v567
          %v608 = vunpack.c.l.b16 %v568
          %v609 = vunpack.c.l.b16 %v569
          %v610 = vunpack.c.l.b16 %v570
          %v611 = vunpack.c.l.b16 %v571
          %v612 = vunpack.c.l.b16 %v572
          %v613 = vunpack.c.l.b16 %v573
          %v614 = vunpack.c.l.b16 %v574
          %v615 = vunpack.c.l.b16 %v575
          %v616 = vunpack.c.l.b16 %v576
          %v617 = vunpack.c.l.b16 %v577
          %v618 = vunpack.c.l.b16 %v578
          %v619 = vunpack.c.l.b16 %v579
          %v620 = vpack.c.b16 %v605, %v604
          %v621 = vpack.c.b16 %v607, %v606
          %v622 = vpack.c.b16 %v609, %v608
          %v623 = vpack.c.b16 %v611, %v610
          %v624 = vpack.c.b16 %v613, %v612
          %v625 = vpack.c.b16 %v615, %v614
          %v626 = vpack.c.b16 %v617, %v616
          %v627 = vpack.c.b16 %v619, %v618
          %v636 = vld [vmem:[#allocation8] sm:$0xf]
          %v637 = vld [vmem:[#allocation8 + $0x4] sm:$0xf]
          %v638 = vld [vmem:[#allocation8 + $0x8] sm:$0xf]
          %v639 = vld [vmem:[#allocation8 + $0xc] sm:$0xf]
          %v640 = vld [vmem:[#allocation8 + $0x10] sm:$0xf]
          %v641 = vld [vmem:[#allocation8 + $0x14] sm:$0xf]
          %v642 = vld [vmem:[#allocation8 + $0x18] sm:$0xf]
          %v643 = vld [vmem:[#allocation8 + $0x1c] sm:$0xf]
          %v644 = vld [vmem:[#allocation8 + $0x20] sm:$0xf]
          %v645 = vld [vmem:[#allocation8 + $0x24] sm:$0xf]
          %v646 = vld [vmem:[#allocation8 + $0x28] sm:$0xf]
          %v647 = vld [vmem:[#allocation8 + $0x2c] sm:$0xf]
          %v648 = vld [vmem:[#allocation8 + $0x30] sm:$0xf]
          %v649 = vld [vmem:[#allocation8 + $0x34] sm:$0xf]
          %v650 = vld [vmem:[#allocation8 + $0x38] sm:$0xf]
          %v651 = vld [vmem:[#allocation8 + $0x3c] sm:$0xf]
          %v652 = vld [vmem:[#allocation8 + $0x40] sm:$0xf]
          %v653 = vld [vmem:[#allocation8 + $0x44] sm:$0xf]
          %v654 = vld [vmem:[#allocation8 + $0x48] sm:$0xf]
          %v655 = vld [vmem:[#allocation8 + $0x4c] sm:$0xf]
          %v656 = vld [vmem:[#allocation8 + $0x50] sm:$0xf]
          %v657 = vld [vmem:[#allocation8 + $0x54] sm:$0xf]
          %v658 = vld [vmem:[#allocation8 + $0x58] sm:$0xf]
          %v659 = vld [vmem:[#allocation8 + $0x5c] sm:$0xf]
          %v660 = vld [vmem:[#allocation8 + $0x60] sm:$0xf]
          %v661 = vld [vmem:[#allocation8 + $0x64] sm:$0xf]
          %v662 = vld [vmem:[#allocation8 + $0x68] sm:$0xf]
          %v663 = vld [vmem:[#allocation8 + $0x6c] sm:$0xf]
          %v664 = vld [vmem:[#allocation8 + $0x70] sm:$0xf]
          %v665 = vld [vmem:[#allocation8 + $0x74] sm:$0xf]
          %v666 = vld [vmem:[#allocation8 + $0x78] sm:$0xf]
          %v667 = vld [vmem:[#allocation8 + $0x7c] sm:$0xf]
          %v668 = vld [vmem:[#allocation9] sm:$0x1]
          %v670 = vlaneseq
          %v671 = vshrl.u32 %v670, 7
          %v672 = vsub.s32 0, %v671
          %v673 = vrot.slane %v668, %v672
          %v707 = vunpack.c.l.b16 %v636
          %v708 = vunpack.c.l.b16 %v637
          %v709 = vunpack.c.l.b16 %v638
          %v710 = vunpack.c.l.b16 %v639
          %v711 = vunpack.c.l.b16 %v640
          %v712 = vunpack.c.l.b16 %v641
          %v713 = vunpack.c.l.b16 %v642
          %v714 = vunpack.c.l.b16 %v643
          %v715 = vunpack.c.l.b16 %v644
          %v716 = vunpack.c.l.b16 %v645
          %v717 = vunpack.c.l.b16 %v646
          %v718 = vunpack.c.l.b16 %v647
          %v719 = vunpack.c.l.b16 %v648
          %v720 = vunpack.c.l.b16 %v649
          %v721 = vunpack.c.l.b16 %v650
          %v722 = vunpack.c.l.b16 %v651
          %v723 = vunpack.c.l.b16 %v652
          %v724 = vunpack.c.l.b16 %v653
          %v725 = vunpack.c.l.b16 %v654
          %v726 = vunpack.c.l.b16 %v655
          %v727 = vunpack.c.l.b16 %v656
          %v728 = vunpack.c.l.b16 %v657
          %v729 = vunpack.c.l.b16 %v658
          %v730 = vunpack.c.l.b16 %v659
          %v731 = vunpack.c.l.b16 %v660
          %v732 = vunpack.c.l.b16 %v661
          %v733 = vunpack.c.l.b16 %v662
          %v734 = vunpack.c.l.b16 %v663
          %v735 = vunpack.c.l.b16 %v664
          %v736 = vunpack.c.l.b16 %v665
          %v737 = vunpack.c.l.b16 %v666
          %v738 = vunpack.c.l.b16 %v667
          %v739 = vpack.c.b16 %v708, %v707
          %v740 = vpack.c.b16 %v710, %v709
          %v741 = vpack.c.b16 %v712, %v711
          %v742 = vpack.c.b16 %v714, %v713
          %v743 = vpack.c.b16 %v716, %v715
          %v744 = vpack.c.b16 %v718, %v717
          %v745 = vpack.c.b16 %v720, %v719
          %v746 = vpack.c.b16 %v722, %v721
          %v747 = vpack.c.b16 %v724, %v723
          %v748 = vpack.c.b16 %v726, %v725
          %v749 = vpack.c.b16 %v728, %v727
          %v750 = vpack.c.b16 %v730, %v729
          %v751 = vpack.c.b16 %v732, %v731
          %v752 = vpack.c.b16 %v734, %v733
          %v753 = vpack.c.b16 %v736, %v735
          %v754 = vpack.c.b16 %v738, %v737
          %771 = vmatprep.subr.bf16.mxu0 0
          %772 = vmatpush1.bf16.msra.mxu0 %v739
          %773 = vmatprep.subr.bf16.mxu0 0
          %774 = vmatpush1.bf16.msra.mxu0 %v740
          %775 = vmatprep.subr.bf16.mxu0 0
          %776 = vmatpush1.bf16.msra.mxu0 %v741
          %777 = vmatprep.subr.bf16.mxu0 0
          %778 = vmatpush1.bf16.msra.mxu0 %v742
          %779 = vmatprep.subr.bf16.mxu0 0
          %780 = vmatpush1.bf16.msra.mxu0 %v743
          %781 = vmatprep.subr.bf16.mxu0 0
          %782 = vmatpush1.bf16.msra.mxu0 %v744
          %783 = vmatprep.subr.bf16.mxu0 0
          %784 = vmatpush1.bf16.msra.mxu0 %v745
          %785 = vmatprep.subr.bf16.mxu0 0
          %786 = vmatpush1.bf16.msra.mxu0 %v746
          %787 = vmatprep.subr.bf16.mxu0 0
          %788 = vmatpush1.bf16.msra.mxu0 %v747
          %789 = vmatprep.subr.bf16.mxu0 0
          %790 = vmatpush1.bf16.msra.mxu0 %v748
          %791 = vmatprep.subr.bf16.mxu0 0
          %792 = vmatpush1.bf16.msra.mxu0 %v749
          %793 = vmatprep.subr.bf16.mxu0 0
          %794 = vmatpush1.bf16.msra.mxu0 %v750
          %795 = vmatprep.subr.bf16.mxu0 0
          %796 = vmatpush1.bf16.msra.mxu0 %v751
          %797 = vmatprep.subr.bf16.mxu0 0
          %798 = vmatpush1.bf16.msra.mxu0 %v752
          %799 = vmatprep.subr.bf16.mxu0 0
          %800 = vmatpush1.bf16.msra.mxu0 %v753
          %801 = vmatprep.subr.bf16.mxu0 0
          %802 = vmatpush1.bf16.msra.mxu0 %v754
          %803 = vmatprep.mubr.bf16.mxu0 %v620
          %804 = vmatmul.mubr.bf16.gmra.mrb[0].mxu0 %v580
          %v805 = vpop.f32.mrb[0].mxu0
          %v806 = vadd.f32 %v673, %v805
          %v807 = vpop.f32.mrb[0].mxu0
          %v808 = vpop.f32.mrb[0].mxu0
          %v809 = vadd.f32 %v673, %v808
          %v810 = vpop.f32.mrb[0].mxu0
          %811 = vmatprep.mubr.bf16.mxu0 %v621
          %812 = vmatmul.mubr.bf16.gmra.mrb[0].mxu0 %v581
          %v813 = vpop.f32.mrb[0].mxu0
          %v814 = vadd.f32 %v673, %v813
          %v815 = vpop.f32.mrb[0].mxu0
          %v816 = vpop.f32.mrb[0].mxu0
          %v817 = vadd.f32 %v673, %v816
          %v818 = vpop.f32.mrb[0].mxu0
          %819 = vmatprep.mubr.bf16.mxu0 %v622
          %820 = vmatmul.mubr.bf16.gmra.mrb[0].mxu0 %v582
          %v821 = vpop.f32.mrb[0].mxu0
          %v822 = vadd.f32 %v673, %v821
          %v823 = vpop.f32.mrb[0].mxu0
          %v824 = vpop.f32.mrb[0].mxu0
          %v825 = vadd.f32 %v673, %v824
          %v826 = vpop.f32.mrb[0].mxu0
          %827 = vmatprep.mubr.bf16.mxu0 %v623
          %828 = vmatmul.mubr.bf16.gmra.mrb[0].mxu0 %v583
          %v829 = vpop.f32.mrb[0].mxu0
          %v830 = vadd.f32 %v673, %v829
          %v831 = vpop.f32.mrb[0].mxu0
          %v832 = vpop.f32.mrb[0].mxu0
          %v833 = vadd.f32 %v673, %v832
          %v834 = vpop.f32.mrb[0].mxu0
          %835 = vmatprep.mubr.bf16.mxu0 %v624
          %836 = vmatmul.mubr.bf16.gmra.mrb[0].mxu0 %v584
          %v837 = vpop.f32.mrb[0].mxu0
          %v838 = vadd.f32 %v673, %v837
          %v839 = vpop.f32.mrb[0].mxu0
          %v840 = vpop.f32.mrb[0].mxu0
          %v841 = vadd.f32 %v673, %v840
          %v842 = vpop.f32.mrb[0].mxu0
          %843 = vmatprep.mubr.bf16.mxu0 %v625
          %844 = vmatmul.mubr.bf16.gmra.mrb[0].mxu0 %v585
          %v845 = vpop.f32.mrb[0].mxu0
          %v846 = vadd.f32 %v673, %v845
          %v847 = vpop.f32.mrb[0].mxu0
          %v848 = vpop.f32.mrb[0].mxu0
          %v849 = vadd.f32 %v673, %v848
          %v850 = vpop.f32.mrb[0].mxu0
          %851 = vmatprep.mubr.bf16.mxu0 %v626
          %852 = vmatmul.mubr.bf16.gmra.mrb[0].mxu0 %v586
          %v853 = vpop.f32.mrb[0].mxu0
          %v854 = vadd.f32 %v673, %v853
          %v855 = vpop.f32.mrb[0].mxu0
          %v856 = vpop.f32.mrb[0].mxu0
          %v857 = vadd.f32 %v673, %v856
          %v858 = vpop.f32.mrb[0].mxu0
          %859 = vmatprep.mubr.bf16.mxu0 %v627
          %860 = vmatmul.mubr.bf16.gmra.mrb[0].mxu0 %v587
          %v861 = vpop.f32.mrb[0].mxu0
          %v862 = vadd.f32 %v673, %v861
          %v863 = vpop.f32.mrb[0].mxu0
          %v864 = vpop.f32.mrb[0].mxu0
          %v865 = vadd.f32 %v673, %v864
          %v866 = vpop.f32.mrb[0].mxu0
          %867 = vdwg.mxu0
          %v868 = vmax.f32 %v806, 0.0
          %v869 = vmax.f32 %v809, 0.0
          %v870 = vmax.f32 %v814, 0.0
          %v871 = vmax.f32 %v817, 0.0
          %v872 = vmax.f32 %v822, 0.0
          %v873 = vmax.f32 %v825, 0.0
          %v874 = vmax.f32 %v830, 0.0
          %v875 = vmax.f32 %v833, 0.0
          %v876 = vmax.f32 %v838, 0.0
          %v877 = vmax.f32 %v841, 0.0
          %v878 = vmax.f32 %v846, 0.0
          %v879 = vmax.f32 %v849, 0.0
          %v880 = vmax.f32 %v854, 0.0
          %v881 = vmax.f32 %v857, 0.0
          %v882 = vmax.f32 %v862, 0.0
          %v883 = vmax.f32 %v865, 0.0
          %v884 = vpack.c.bf16 %v869, %v868
          %v885 = vpack.c.bf16 %v871, %v870
          %v886 = vpack.c.bf16 %v873, %v872
          %v887 = vpack.c.bf16 %v875, %v874
          %v888 = vpack.c.bf16 %v877, %v876
          %v889 = vpack.c.bf16 %v879, %v878
          %v890 = vpack.c.bf16 %v881, %v880
          %v891 = vpack.c.bf16 %v883, %v882
          %s892 = sshra.s32 %s330, 4
          %s893 = sand.u32 %s330, 15
          %s894 = smul.addr %s892, 8
          %s895 = scalar_lea.vmem [#allocation2], %s894
          %896 = vst [vmem:[%s895] sm:$0xff] %v884
          %897 = vst [vmem:[%s895 + $0x8] sm:$0xff] %v885
          %898 = vst [vmem:[%s895 + $0x10] sm:$0xff] %v886
          %899 = vst [vmem:[%s895 + $0x18] sm:$0xff] %v887
          %900 = vst [vmem:[%s895 + $0x20] sm:$0xff] %v888
          %901 = vst [vmem:[%s895 + $0x28] sm:$0xff] %v889
          %902 = vst [vmem:[%s895 + $0x30] sm:$0xff] %v890
          %903 = vst [vmem:[%s895 + $0x38] sm:$0xff] %v891
        $region72: #{sage_forward.1} parent=43 // pred_fallthru
          _
        %p904 = scmp.eq.s32.totalorder %s26, 1
        // Predicated region
        $region73: #{sage_forward.1} parent=43 // pred_check
          %p905 = pneg %p904
        $region74: #{sage_forward.1} parent=43 // pred_check_branch
          %907 = sbr.rel (%p905) target = $region76
        $region75: #{sage_forward.1} parent=43 // pred_region
          %v908 = vld [vmem:[#allocation3] sm:$0xf]
          %v909 = vld [vmem:[#allocation3 + $0x4] sm:$0xf]
          %v910 = vld [vmem:[#allocation3 + $0x8] sm:$0xf]
          %v911 = vld [vmem:[#allocation3 + $0xc] sm:$0xf]
          %v912 = vld [vmem:[#allocation3 + $0x10] sm:$0xf]
          %v913 = vld [vmem:[#allocation3 + $0x14] sm:$0xf]
          %v914 = vld [vmem:[#allocation3 + $0x18] sm:$0xf]
          %v915 = vld [vmem:[#allocation3 + $0x1c] sm:$0xf]
          %v916 = vld [vmem:[#allocation3 + $0x20] sm:$0xf]
          %v917 = vld [vmem:[#allocation3 + $0x24] sm:$0xf]
          %v918 = vld [vmem:[#allocation3 + $0x28] sm:$0xf]
          %v919 = vld [vmem:[#allocation3 + $0x2c] sm:$0xf]
          %v920 = vld [vmem:[#allocation3 + $0x30] sm:$0xf]
          %v921 = vld [vmem:[#allocation3 + $0x34] sm:$0xf]
          %v922 = vld [vmem:[#allocation3 + $0x38] sm:$0xf]
          %v923 = vld [vmem:[#allocation3 + $0x3c] sm:$0xf]
          %v924 = vld [vmem:[#allocation2] sm:$0xff]
          %v925 = vld [vmem:[#allocation2 + $0x8] sm:$0xff]
          %v926 = vld [vmem:[#allocation2 + $0x10] sm:$0xff]
          %v927 = vld [vmem:[#allocation2 + $0x18] sm:$0xff]
          %v928 = vld [vmem:[#allocation2 + $0x20] sm:$0xff]
          %v929 = vld [vmem:[#allocation2 + $0x28] sm:$0xff]
          %v930 = vld [vmem:[#allocation2 + $0x30] sm:$0xff]
          %v931 = vld [vmem:[#allocation2 + $0x38] sm:$0xff]
          %v948 = vunpack.c.l.b16 %v908
          %v949 = vunpack.c.l.b16 %v909
          %v950 = vunpack.c.l.b16 %v910
          %v951 = vunpack.c.l.b16 %v911
          %v952 = vunpack.c.l.b16 %v912
          %v953 = vunpack.c.l.b16 %v913
          %v954 = vunpack.c.l.b16 %v914
          %v955 = vunpack.c.l.b16 %v915
          %v956 = vunpack.c.l.b16 %v916
          %v957 = vunpack.c.l.b16 %v917
          %v958 = vunpack.c.l.b16 %v918
          %v959 = vunpack.c.l.b16 %v919
          %v960 = vunpack.c.l.b16 %v920
          %v961 = vunpack.c.l.b16 %v921
          %v962 = vunpack.c.l.b16 %v922
          %v963 = vunpack.c.l.b16 %v923
          %v964 = vpack.c.b16 %v949, %v948
          %v965 = vpack.c.b16 %v951, %v950
          %v966 = vpack.c.b16 %v953, %v952
          %v967 = vpack.c.b16 %v955, %v954
          %v968 = vpack.c.b16 %v957, %v956
          %v969 = vpack.c.b16 %v959, %v958
          %v970 = vpack.c.b16 %v961, %v960
          %v971 = vpack.c.b16 %v963, %v962
          %980 = vmatprep.subr.bf16.mxu0 0
          %981 = vmatpush1.bf16.msra.mxu0 %v924
          %982 = vmatprep.subr.bf16.mxu0 0
          %983 = vmatpush1.bf16.msra.mxu0 %v925
          %984 = vmatprep.subr.bf16.mxu0 0
          %985 = vmatpush1.bf16.msra.mxu0 %v926
          %986 = vmatprep.subr.bf16.mxu0 0
          %987 = vmatpush1.bf16.msra.mxu0 %v927
          %988 = vmatprep.subr.bf16.mxu0 0
          %989 = vmatpush1.bf16.msra.mxu0 %v928
          %990 = vmatprep.subr.bf16.mxu0 0
          %991 = vmatpush1.bf16.msra.mxu0 %v929
          %992 = vmatprep.subr.bf16.mxu0 0
          %993 = vmatpush1.bf16.msra.mxu0 %v930
          %994 = vmatprep.subr.bf16.mxu0 0
          %995 = vmatpush1.bf16.msra.mxu0 %v931
          %996 = vmatprep.subr.bf16.mxu0 0
          %997 = vmatpush1.bf16.msra.mxu0 0
          %998 = vmatprep.subr.bf16.mxu0 0
          %999 = vmatpush1.bf16.msra.mxu0 0
          %1000 = vmatprep.subr.bf16.mxu0 0
          %1001 = vmatpush1.bf16.msra.mxu0 0
          %1002 = vmatprep.subr.bf16.mxu0 0
          %1003 = vmatpush1.bf16.msra.mxu0 0
          %1004 = vmatprep.subr.bf16.mxu0 0
          %1005 = vmatpush1.bf16.msra.mxu0 0
          %1006 = vmatprep.subr.bf16.mxu0 0
          %1007 = vmatpush1.bf16.msra.mxu0 0
          %1008 = vmatprep.subr.bf16.mxu0 0
          %1009 = vmatpush1.bf16.msra.mxu0 0
          %1010 = vmatprep.subr.bf16.mxu0 0
          %1011 = vmatpush1.bf16.msra.mxu0 0
          %1012 = vmatprep.mubr.bf16.mxu0 0
          %1013 = vmatmul.mubr.bf16.gmra.mrb[0].mxu0 %v964
          %v1014 = vpop.f32.mrb[0].mxu0
          %v1015 = vadd.f32 0.0, %v1014
          %v1016 = vpop.f32.mrb[0].mxu0
          %v1017 = vpop.f32.mrb[0].mxu0
          %v1018 = vadd.f32 0.0, %v1017
          %v1019 = vpop.f32.mrb[0].mxu0
          %1020 = vmatprep.mubr.bf16.mxu0 0
          %1021 = vmatmul.mubr.bf16.gmra.mrb[0].mxu0 %v965
          %v1022 = vpop.f32.mrb[0].mxu0
          %v1023 = vadd.f32 0.0, %v1022
          %v1024 = vpop.f32.mrb[0].mxu0
          %v1025 = vpop.f32.mrb[0].mxu0
          %v1026 = vadd.f32 0.0, %v1025
          %v1027 = vpop.f32.mrb[0].mxu0
          %1028 = vmatprep.mubr.bf16.mxu0 0
          %1029 = vmatmul.mubr.bf16.gmra.mrb[0].mxu0 %v966
          %v1030 = vpop.f32.mrb[0].mxu0
          %v1031 = vadd.f32 0.0, %v1030
          %v1032 = vpop.f32.mrb[0].mxu0
          %v1033 = vpop.f32.mrb[0].mxu0
          %v1034 = vadd.f32 0.0, %v1033
          %v1035 = vpop.f32.mrb[0].mxu0
          %1036 = vmatprep.mubr.bf16.mxu0 0
          %1037 = vmatmul.mubr.bf16.gmra.mrb[0].mxu0 %v967
          %v1038 = vpop.f32.mrb[0].mxu0
          %v1039 = vadd.f32 0.0, %v1038
          %v1040 = vpop.f32.mrb[0].mxu0
          %v1041 = vpop.f32.mrb[0].mxu0
          %v1042 = vadd.f32 0.0, %v1041
          %v1043 = vpop.f32.mrb[0].mxu0
          %1044 = vmatprep.mubr.bf16.mxu0 0
          %1045 = vmatmul.mubr.bf16.gmra.mrb[0].mxu0 %v968
          %v1046 = vpop.f32.mrb[0].mxu0
          %v1047 = vadd.f32 0.0, %v1046
          %v1048 = vpop.f32.mrb[0].mxu0
          %v1049 = vpop.f32.mrb[0].mxu0
          %v1050 = vadd.f32 0.0, %v1049
          %v1051 = vpop.f32.mrb[0].mxu0
          %1052 = vmatprep.mubr.bf16.mxu0 0
          %1053 = vmatmul.mubr.bf16.gmra.mrb[0].mxu0 %v969
          %v1054 = vpop.f32.mrb[0].mxu0
          %v1055 = vadd.f32 0.0, %v1054
          %v1056 = vpop.f32.mrb[0].mxu0
          %v1057 = vpop.f32.mrb[0].mxu0
          %v1058 = vadd.f32 0.0, %v1057
          %v1059 = vpop.f32.mrb[0].mxu0
          %1060 = vmatprep.mubr.bf16.mxu0 0
          %1061 = vmatmul.mubr.bf16.gmra.mrb[0].mxu0 %v970
          %v1062 = vpop.f32.mrb[0].mxu0
          %v1063 = vadd.f32 0.0, %v1062
          %v1064 = vpop.f32.mrb[0].mxu0
          %v1065 = vpop.f32.mrb[0].mxu0
          %v1066 = vadd.f32 0.0, %v1065
          %v1067 = vpop.f32.mrb[0].mxu0
          %1068 = vmatprep.mubr.bf16.mxu0 0
          %1069 = vmatmul.mubr.bf16.gmra.mrb[0].mxu0 %v971
          %v1070 = vpop.f32.mrb[0].mxu0
          %v1071 = vadd.f32 0.0, %v1070
          %v1072 = vpop.f32.mrb[0].mxu0
          %v1073 = vpop.f32.mrb[0].mxu0
          %v1074 = vadd.f32 0.0, %v1073
          %v1075 = vpop.f32.mrb[0].mxu0
          %1076 = vdwg.mxu0
          %s1077 = sshra.s32 %s330, 4
          %s1078 = sand.u32 %s330, 15
          %s1079 = smul.addr %s1077, 8
          %s1080 = scalar_lea.vmem [#allocation2], %s1079
          %v1081 = vld [vmem:[%s1080] sm:$0xff]
          %v1082 = vld [vmem:[%s1080 + $0x8] sm:$0xff]
          %v1083 = vld [vmem:[%s1080 + $0x10] sm:$0xff]
          %v1084 = vld [vmem:[%s1080 + $0x18] sm:$0xff]
          %v1085 = vld [vmem:[%s1080 + $0x20] sm:$0xff]
          %v1086 = vld [vmem:[%s1080 + $0x28] sm:$0xff]
          %v1087 = vld [vmem:[%s1080 + $0x30] sm:$0xff]
          %v1088 = vld [vmem:[%s1080 + $0x38] sm:$0xff]
          %v1089 = vpack.c.bf16 %v1018, %v1015
          %v1090 = vpack.c.bf16 %v1026, %v1023
          %v1091 = vpack.c.bf16 %v1034, %v1031
          %v1092 = vpack.c.bf16 %v1042, %v1039
          %v1093 = vpack.c.bf16 %v1050, %v1047
          %v1094 = vpack.c.bf16 %v1058, %v1055
          %v1095 = vpack.c.bf16 %v1066, %v1063
          %v1096 = vpack.c.bf16 %v1074, %v1071
          %v1097 = vld [vmem:[#allocation11] sm:$0xf]
          %v1098 = vld [vmem:[#allocation11 + $0x4] sm:$0xf]
          %v1099 = vld [vmem:[#allocation11 + $0x8] sm:$0xf]
          %v1100 = vld [vmem:[#allocation11 + $0xc] sm:$0xf]
          %v1101 = vld [vmem:[#allocation11 + $0x10] sm:$0xf]
          %v1102 = vld [vmem:[#allocation11 + $0x14] sm:$0xf]
          %v1103 = vld [vmem:[#allocation11 + $0x18] sm:$0xf]
          %v1104 = vld [vmem:[#allocation11 + $0x1c] sm:$0xf]
          %v1105 = vld [vmem:[#allocation11 + $0x20] sm:$0xf]
          %v1106 = vld [vmem:[#allocation11 + $0x24] sm:$0xf]
          %v1107 = vld [vmem:[#allocation11 + $0x28] sm:$0xf]
          %v1108 = vld [vmem:[#allocation11 + $0x2c] sm:$0xf]
          %v1109 = vld [vmem:[#allocation11 + $0x30] sm:$0xf]
          %v1110 = vld [vmem:[#allocation11 + $0x34] sm:$0xf]
          %v1111 = vld [vmem:[#allocation11 + $0x38] sm:$0xf]
          %v1112 = vld [vmem:[#allocation11 + $0x3c] sm:$0xf]
          %v1113 = vld [vmem:[#allocation11 + $0x40] sm:$0xf]
          %v1114 = vld [vmem:[#allocation11 + $0x44] sm:$0xf]
          %v1115 = vld [vmem:[#allocation11 + $0x48] sm:$0xf]
          %v1116 = vld [vmem:[#allocation11 + $0x4c] sm:$0xf]
          %v1117 = vld [vmem:[#allocation11 + $0x50] sm:$0xf]
          %v1118 = vld [vmem:[#allocation11 + $0x54] sm:$0xf]
          %v1119 = vld [vmem:[#allocation11 + $0x58] sm:$0xf]
          %v1120 = vld [vmem:[#allocation11 + $0x5c] sm:$0xf]
          %v1121 = vld [vmem:[#allocation11 + $0x60] sm:$0xf]
          %v1122 = vld [vmem:[#allocation11 + $0x64] sm:$0xf]
          %v1123 = vld [vmem:[#allocation11 + $0x68] sm:$0xf]
          %v1124 = vld [vmem:[#allocation11 + $0x6c] sm:$0xf]
          %v1125 = vld [vmem:[#allocation11 + $0x70] sm:$0xf]
          %v1126 = vld [vmem:[#allocation11 + $0x74] sm:$0xf]
          %v1127 = vld [vmem:[#allocation11 + $0x78] sm:$0xf]
          %v1128 = vld [vmem:[#allocation11 + $0x7c] sm:$0xf]
          %v1129 = vld [vmem:[#allocation12] sm:$0x1]
          %v1131 = vlaneseq
          %v1132 = vshrl.u32 %v1131, 7
          %v1133 = vsub.s32 0, %v1132
          %v1134 = vrot.slane %v1129, %v1133
          %v1168 = vunpack.c.l.b16 %v1097
          %v1169 = vunpack.c.l.b16 %v1098
          %v1170 = vunpack.c.l.b16 %v1099
          %v1171 = vunpack.c.l.b16 %v1100
          %v1172 = vunpack.c.l.b16 %v1101
          %v1173 = vunpack.c.l.b16 %v1102
          %v1174 = vunpack.c.l.b16 %v1103
          %v1175 = vunpack.c.l.b16 %v1104
          %v1176 = vunpack.c.l.b16 %v1105
          %v1177 = vunpack.c.l.b16 %v1106
          %v1178 = vunpack.c.l.b16 %v1107
          %v1179 = vunpack.c.l.b16 %v1108
          %v1180 = vunpack.c.l.b16 %v1109
          %v1181 = vunpack.c.l.b16 %v1110
          %v1182 = vunpack.c.l.b16 %v1111
          %v1183 = vunpack.c.l.b16 %v1112
          %v1184 = vunpack.c.l.b16 %v1113
          %v1185 = vunpack.c.l.b16 %v1114
          %v1186 = vunpack.c.l.b16 %v1115
          %v1187 = vunpack.c.l.b16 %v1116
          %v1188 = vunpack.c.l.b16 %v1117
          %v1189 = vunpack.c.l.b16 %v1118
          %v1190 = vunpack.c.l.b16 %v1119
          %v1191 = vunpack.c.l.b16 %v1120
          %v1192 = vunpack.c.l.b16 %v1121
          %v1193 = vunpack.c.l.b16 %v1122
          %v1194 = vunpack.c.l.b16 %v1123
          %v1195 = vunpack.c.l.b16 %v1124
          %v1196 = vunpack.c.l.b16 %v1125
          %v1197 = vunpack.c.l.b16 %v1126
          %v1198 = vunpack.c.l.b16 %v1127
          %v1199 = vunpack.c.l.b16 %v1128
          %v1200 = vpack.c.b16 %v1169, %v1168
          %v1201 = vpack.c.b16 %v1171, %v1170
          %v1202 = vpack.c.b16 %v1173, %v1172
          %v1203 = vpack.c.b16 %v1175, %v1174
          %v1204 = vpack.c.b16 %v1177, %v1176
          %v1205 = vpack.c.b16 %v1179, %v1178
          %v1206 = vpack.c.b16 %v1181, %v1180
          %v1207 = vpack.c.b16 %v1183, %v1182
          %v1208 = vpack.c.b16 %v1185, %v1184
          %v1209 = vpack.c.b16 %v1187, %v1186
          %v1210 = vpack.c.b16 %v1189, %v1188
          %v1211 = vpack.c.b16 %v1191, %v1190
          %v1212 = vpack.c.b16 %v1193, %v1192
          %v1213 = vpack.c.b16 %v1195, %v1194
          %v1214 = vpack.c.b16 %v1197, %v1196
          %v1215 = vpack.c.b16 %v1199, %v1198
          %1232 = vmatprep.subr.bf16.mxu0 0
          %1233 = vmatpush1.bf16.msra.mxu0 %v1200
          %1234 = vmatprep.subr.bf16.mxu0 0
          %1235 = vmatpush1.bf16.msra.mxu0 %v1201
          %1236 = vmatprep.subr.bf16.mxu0 0
          %1237 = vmatpush1.bf16.msra.mxu0 %v1202
          %1238 = vmatprep.subr.bf16.mxu0 0
          %1239 = vmatpush1.bf16.msra.mxu0 %v1203
          %1240 = vmatprep.subr.bf16.mxu0 0
          %1241 = vmatpush1.bf16.msra.mxu0 %v1204
          %1242 = vmatprep.subr.bf16.mxu0 0
          %1243 = vmatpush1.bf16.msra.mxu0 %v1205
          %1244 = vmatprep.subr.bf16.mxu0 0
          %1245 = vmatpush1.bf16.msra.mxu0 %v1206
          %1246 = vmatprep.subr.bf16.mxu0 0
          %1247 = vmatpush1.bf16.msra.mxu0 %v1207
          %1248 = vmatprep.subr.bf16.mxu0 0
          %1249 = vmatpush1.bf16.msra.mxu0 %v1208
          %1250 = vmatprep.subr.bf16.mxu0 0
          %1251 = vmatpush1.bf16.msra.mxu0 %v1209
          %1252 = vmatprep.subr.bf16.mxu0 0
          %1253 = vmatpush1.bf16.msra.mxu0 %v1210
          %1254 = vmatprep.subr.bf16.mxu0 0
          %1255 = vmatpush1.bf16.msra.mxu0 %v1211
          %1256 = vmatprep.subr.bf16.mxu0 0
          %1257 = vmatpush1.bf16.msra.mxu0 %v1212
          %1258 = vmatprep.subr.bf16.mxu0 0
          %1259 = vmatpush1.bf16.msra.mxu0 %v1213
          %1260 = vmatprep.subr.bf16.mxu0 0
          %1261 = vmatpush1.bf16.msra.mxu0 %v1214
          %1262 = vmatprep.subr.bf16.mxu0 0
          %1263 = vmatpush1.bf16.msra.mxu0 %v1215
          %1264 = vmatprep.mubr.bf16.mxu0 %v1081
          %1265 = vmatmul.mubr.bf16.gmra.mrb[0].mxu0 %v1089
          %v1266 = vpop.f32.mrb[0].mxu0
          %v1267 = vadd.f32 %v1134, %v1266
          %v1268 = vpop.f32.mrb[0].mxu0
          %v1269 = vpop.f32.mrb[0].mxu0
          %v1270 = vadd.f32 %v1134, %v1269
          %v1271 = vpop.f32.mrb[0].mxu0
          %1272 = vmatprep.mubr.bf16.mxu0 %v1082
          %1273 = vmatmul.mubr.bf16.gmra.mrb[0].mxu0 %v1090
          %v1274 = vpop.f32.mrb[0].mxu0
          %v1275 = vadd.f32 %v1134, %v1274
          %v1276 = vpop.f32.mrb[0].mxu0
          %v1277 = vpop.f32.mrb[0].mxu0
          %v1278 = vadd.f32 %v1134, %v1277
          %v1279 = vpop.f32.mrb[0].mxu0
          %1280 = vmatprep.mubr.bf16.mxu0 %v1083
          %1281 = vmatmul.mubr.bf16.gmra.mrb[0].mxu0 %v1091
          %v1282 = vpop.f32.mrb[0].mxu0
          %v1283 = vadd.f32 %v1134, %v1282
          %v1284 = vpop.f32.mrb[0].mxu0
          %v1285 = vpop.f32.mrb[0].mxu0
          %v1286 = vadd.f32 %v1134, %v1285
          %v1287 = vpop.f32.mrb[0].mxu0
          %1288 = vmatprep.mubr.bf16.mxu0 %v1084
          %1289 = vmatmul.mubr.bf16.gmra.mrb[0].mxu0 %v1092
          %v1290 = vpop.f32.mrb[0].mxu0
          %v1291 = vadd.f32 %v1134, %v1290
          %v1292 = vpop.f32.mrb[0].mxu0
          %v1293 = vpop.f32.mrb[0].mxu0
          %v1294 = vadd.f32 %v1134, %v1293
          %v1295 = vpop.f32.mrb[0].mxu0
          %1296 = vmatprep.mubr.bf16.mxu0 %v1085
          %1297 = vmatmul.mubr.bf16.gmra.mrb[0].mxu0 %v1093
          %v1298 = vpop.f32.mrb[0].mxu0
          %v1299 = vadd.f32 %v1134, %v1298
          %v1300 = vpop.f32.mrb[0].mxu0
          %v1301 = vpop.f32.mrb[0].mxu0
          %v1302 = vadd.f32 %v1134, %v1301
          %v1303 = vpop.f32.mrb[0].mxu0
          %1304 = vmatprep.mubr.bf16.mxu0 %v1086
          %1305 = vmatmul.mubr.bf16.gmra.mrb[0].mxu0 %v1094
          %v1306 = vpop.f32.mrb[0].mxu0
          %v1307 = vadd.f32 %v1134, %v1306
          %v1308 = vpop.f32.mrb[0].mxu0
          %v1309 = vpop.f32.mrb[0].mxu0
          %v1310 = vadd.f32 %v1134, %v1309
          %v1311 = vpop.f32.mrb[0].mxu0
          %1312 = vmatprep.mubr.bf16.mxu0 %v1087
          %1313 = vmatmul.mubr.bf16.gmra.mrb[0].mxu0 %v1095
          %v1314 = vpop.f32.mrb[0].mxu0
          %v1315 = vadd.f32 %v1134, %v1314
          %v1316 = vpop.f32.mrb[0].mxu0
          %v1317 = vpop.f32.mrb[0].mxu0
          %v1318 = vadd.f32 %v1134, %v1317
          %v1319 = vpop.f32.mrb[0].mxu0
          %1320 = vmatprep.mubr.bf16.mxu0 %v1088
          %1321 = vmatmul.mubr.bf16.gmra.mrb[0].mxu0 %v1096
          %v1322 = vpop.f32.mrb[0].mxu0
          %v1323 = vadd.f32 %v1134, %v1322
          %v1324 = vpop.f32.mrb[0].mxu0
          %v1325 = vpop.f32.mrb[0].mxu0
          %v1326 = vadd.f32 %v1134, %v1325
          %v1327 = vpop.f32.mrb[0].mxu0
          %1328 = vdwg.mxu0
          %1329 = vst [vmem:[#allocation14] sm:$0xff] %v1267
          %1330 = vst [vmem:[#allocation14 + $0x8] sm:$0xff] %v1270
          %1331 = vst [vmem:[#allocation14 + $0x10] sm:$0xff] %v1275
          %1332 = vst [vmem:[#allocation14 + $0x18] sm:$0xff] %v1278
          %1333 = vst [vmem:[#allocation14 + $0x20] sm:$0xff] %v1283
          %1334 = vst [vmem:[#allocation14 + $0x28] sm:$0xff] %v1286
          %1335 = vst [vmem:[#allocation14 + $0x30] sm:$0xff] %v1291
          %1336 = vst [vmem:[#allocation14 + $0x38] sm:$0xff] %v1294
          %1337 = vst [vmem:[#allocation14 + $0x40] sm:$0xff] %v1299
          %1338 = vst [vmem:[#allocation14 + $0x48] sm:$0xff] %v1302
          %1339 = vst [vmem:[#allocation14 + $0x50] sm:$0xff] %v1307
          %1340 = vst [vmem:[#allocation14 + $0x58] sm:$0xff] %v1310
          %1341 = vst [vmem:[#allocation14 + $0x60] sm:$0xff] %v1315
          %1342 = vst [vmem:[#allocation14 + $0x68] sm:$0xff] %v1318
          %1343 = vst [vmem:[#allocation14 + $0x70] sm:$0xff] %v1323
          %1344 = vst [vmem:[#allocation14 + $0x78] sm:$0xff] %v1326
        $region76: #{sage_forward.1} parent=43 // pred_fallthru
          _
        // Predicated region
        $region77: #{sage_forward.1} parent=43 // pred_check
          %p1345 = pneg %p183
        $region78: #{sage_forward.1} parent=43 // pred_check_branch
          %1347 = sbr.rel (%p1345) target = $region80
        $region79: #{sage_forward.1} parent=43 // pred_region
          %s1348 = smul.u32 16, %s27
          %s1350 = ssub.s32 2048, 2048
          %1351 = vsyncadd [#allocation5], %s1350
          %s1352 = smul.addr %s1348, 128
          %s1353 = scalar_lea.hbm %s6, %s1352
          %s1354 = sshll.u32 [#allocation14], 4
          %s1355 = int_to_ptr.vmem [resolvable:$true] %s1354
          %1360 = dma.vmem_to_hbm [thread:$0]  %s1355, 2048, %s1353, [#allocation5], 128, 128, 8
        $region80: #{sage_forward.1} parent=43 // pred_fallthru
          _
        // Predicated region
        $region81: #{sage_forward.1} parent=43 // pred_check
          %p1361 = pneg %p183
        $region82: #{sage_forward.1} parent=43 // pred_check_branch
          %1363 = sbr.rel (%p1361) target = $region84
        $region83: #{sage_forward.1} parent=43 // pred_region
          %1364 = dma.done [#allocation5], 2048
        $region84: #{sage_forward.1} parent=43 // pred_fallthru
          _
      $region44: #{sage_forward.1} parent=5 // pred_fallthru
        _
      %p1365 = scmp.le.s32.totalorder 2, %s17
      // Predicated region
      $region85: #{sage_forward.1} parent=5 // pred_check
        %p1366 = pneg %p1365
      $region86: #{sage_forward.1} parent=5 // pred_check_branch
        %1368 = sbr.rel (%p1366) target = $region88
      $region87: #{sage_forward.1} parent=5 // pred_region
        %s1369 = ssub.s32 %s17, 2
      $region88: #{sage_forward.1} parent=5 // pred_fallthru
        _
    $region6: #{sage_forward.1} parent=1 // loop_footer
      %s21 = sadd.s32 1, %s17
    $region7: #{sage_forward.1} parent=1 // loop_footer_branch
      %16 = sbr.rel target = $region3
    $region8: #{sage_forward.1} parent=1 // loop_exit
      _
    %1370 = vsyncpa [#allocation4], 1
    %s1371 = scalar_lea.sflag [#allocation4], 1
    %1372 = vsyncpa %s1371, 1
    %1373 = vsyncpa [#allocation7], 1
    %1374 = vsyncpa [#allocation10], 1
    %1375 = vsyncpa [#allocation13], 1
    %1376 = vsyncpa [#allocation5], 1
    %s1377 = scalar_lea.sflag [#allocation5], 1
    %1378 = vsyncpa %s1377, 1

</llo_original>
